<compile_context>
chip_gen: v7x
topology: tpu7x:2x2x1
jax: 0.10.0
libtpu: 0.0.40
codegen_flags: <defaults>
</compile_context>

<pallas_src>
import math
from functools import partial
from typing import NamedTuple

import jax
import jax.numpy as jnp
from jax.experimental import pallas as pl
from jax.experimental.pallas import tpu as pltpu

_MiB = 1024 * 1024


def _round_up(a, b):
    return (a + b - 1) // b * b


# ---------------------------------------------------------------------------
# One-time (import-time) hardware / feature detection. Keeps the per-call hot
# path free of device syncs, feature re-probing and try/except fallbacks.
# ---------------------------------------------------------------------------
def _query_device():
    vmem_cap = 128 * _MiB
    kind = ""
    try:
        vmem_cap = int(pltpu.get_tpu_info().vmem_capacity_bytes)
    except Exception:
        pass
    try:
        kind = jax.devices()[0].device_kind.lower()
    except Exception:
        pass
    return vmem_cap, kind


def _probe_buffered():
    """Feature-probe pl.Buffered(pipeline_mode=...) once with a tiny kernel."""
    try:
        def k(x_ref, o_ref):
            o_ref[...] = x_ref[...] * 2.0

        f = pl.pallas_call(
            k,
            out_shape=jax.ShapeDtypeStruct((8, 128), jnp.float32),
            grid=(1,),
            in_specs=[pl.BlockSpec((8, 128), lambda i: (0, 0),
                                   pipeline_mode=pl.Buffered(1))],
            out_specs=pl.BlockSpec((8, 128), lambda i: (0, 0)),
        )
        jax.block_until_ready(f(jnp.ones((8, 128), jnp.float32)))
        return True
    except Exception:
        return False


_VMEM_CAP_BYTES, _DEVICE_KIND = _query_device()
_IS_V5E = ("v5e" in _DEVICE_KIND) or ("v5 lite" in _DEVICE_KIND) or ("v5lite" in _DEVICE_KIND)
_IS_V6E = "v6" in _DEVICE_KIND
_IS_V7X = ("v7" in _DEVICE_KIND) or (_VMEM_CAP_BYTES <= 80 * _MiB)
_HAS_BUFFERED = _probe_buffered()


# ---------------------------------------------------------------------------
# Kernel
# ---------------------------------------------------------------------------
def _make_ffn_kernel(h_chunk):
    def kernel(x_ref, w1_ref, b1_ref, w2_ref, b2_ref, o_ref, h_ref):
        Hp = h_ref.shape[1]

        # First linear + bias + ReLU: computed once per M-tile (j == 0), staged
        # in VMEM scratch in the matmul dtype. The f32 intermediate is produced
        # in Hp-column chunks so peak VMEM / vreg pressure stays bounded.
        @pl.when(pl.program_id(1) == 0)
        def _():
            x = x_ref[...]
            for c in range(0, Hp, h_chunk):
                h = jnp.dot(x, w1_ref[:, c:c + h_chunk],
                            preferred_element_type=jnp.float32)
                h = jnp.maximum(h + b1_ref[:, c:c + h_chunk], 0.0)
                h_ref[:, c:c + h_chunk] = h.astype(h_ref.dtype)

        # Second linear over the current vocab tile (W2 streamed along j).
        y = jnp.dot(h_ref[...], w2_ref[...], preferred_element_type=jnp.float32)
        o_ref[...] = (y + b2_ref[...]).astype(o_ref.dtype)

    return kernel


# ---------------------------------------------------------------------------
# Config selection (trace-time Python on static shapes)
# ---------------------------------------------------------------------------
def _select_config(M, Kp, Hp, Np, compute_dtype, out_dtype):
    cb = jnp.dtype(compute_dtype).itemsize
    ob = jnp.dtype(out_dtype).itemsize
    sublane = 16 if cb == 2 else 8

    # Generation-dependent VMEM request (leave headroom for compiler scratch):
    #   v5e/v6e: 128 MiB physical -> allow ~100 MiB
    #   v7x    :  64 MiB physical -> request <= ~51 MiB
    if _IS_V7X or _VMEM_CAP_BYTES < 96 * _MiB:
        budget = min(52 * _MiB, int(0.8 * _VMEM_CAP_BYTES))
    else:
        budget = 100 * _MiB

    # tile_m sets the arithmetic intensity of the re-streamed W2 operand
    # (v6e roofline wants ~650 bf16 flops/byte -> push toward 1024 there).
    target_m = 1024 if _IS_V6E else 512
    Msub = _round_up(M, sublane)
    tile_m = min(target_m, Msub)
    # v7x: keep >= 2 M-tiles so both TensorCores get work on the parallel axis.
    if _IS_V7X and Msub >= 2 * sublane and _round_up(M, tile_m) // tile_m < 2:
        tile_m = _round_up(pl.cdiv(M, 2), sublane)

    w1_bufs = 1 if _HAS_BUFFERED else 2                 # resident weight: 1 buffer
    w2_bufs = 3 if (_IS_V5E and _HAS_BUFFERED) else 2   # deeper W2 pipeline on v5e

    # tile_n only sets buffer size (total W2 traffic unchanged): keep the W2
    # buffers under ~30% of the budget, spend the remaining VMEM on tile_m.
    tile_n = 128
    for cand in (512, 256, 128):
        if Np % cand == 0 and w2_bufs * Hp * cand * cb <= 0.30 * budget:
            tile_n = cand
            break

    h_chunk = 128
    for cand in (512, 256, 128):
        if Hp % cand == 0:
            h_chunk = cand
            break

    def need(tm, tn):
        return (2 * tm * Kp * cb                      # x tiles (double-buffered)
                + w1_bufs * (Kp * Hp * cb + Hp * 4)   # resident W1 / b1
                + w2_bufs * (Hp * tn * cb + tn * 4)   # streamed W2 / b2
                + 2 * tm * tn * ob                    # output tiles
                + tm * Hp * cb                        # staged h (compute dtype)
                + tm * h_chunk * 4                    # f32 chunk temp (matmul 1)
                + tm * tn * 4)                        # f32 temp (matmul 2)

    while tile_m > sublane and need(tile_m, tile_n) > budget:
        tile_m = max(sublane, _round_up(tile_m // 2, sublane))
    while tile_n > 128 and need(tile_m, tile_n) > budget:
        tile_n //= 2

    vmem_limit = int(min(budget, max(8 * _MiB, int(1.5 * need(tile_m, tile_n)))))
    return tile_m, tile_n, h_chunk, w1_bufs, w2_bufs, vmem_limit


# ---------------------------------------------------------------------------
# Parameters: pad + cast ONCE, outside the per-call path.
# ---------------------------------------------------------------------------
class FFNParams(NamedTuple):
    w1p: jax.Array   # (Kp, Hp)  compute dtype
    b1p: jax.Array   # (1, Hp)   f32
    w2p: jax.Array   # (Hp, Np)  compute dtype
    b2p: jax.Array   # (1, Np)   f32
    n_embd: int
    hidden: int
    vocab_dim: int


def prepare_ffn_params(w1, b1, w2, b2, compute_dtype=jnp.bfloat16):
    """Pad to lane-dense 128-multiples and cast to the MXU dtype, once."""
    K, H = w1.shape
    _, N = w2.shape
    Kp, Hp, Np = _round_up(K, 128), _round_up(H, 128), _round_up(N, 128)
    w1p = jnp.pad(w1.astype(compute_dtype), ((0, Kp - K), (0, Hp - H)))
    b1p = jnp.pad(b1.astype(jnp.float32), (0, Hp - H)).reshape(1, Hp)
    w2p = jnp.pad(w2.astype(compute_dtype), ((0, Hp - H), (0, Np - N)))
    b2p = jnp.pad(b2.astype(jnp.float32), (0, Np - N)).reshape(1, Np)
    w1p, b1p, w2p, b2p = jax.device_put((w1p, b1p, w2p, b2p))
    return FFNParams(w1p, b1p, w2p, b2p, K, H, N)


# ---------------------------------------------------------------------------
# Forward (jitted; no device syncs, no fallbacks in the hot path)
# ---------------------------------------------------------------------------
@partial(jax.jit, static_argnums=(5,))
def _ffn_forward(x, w1p, b1p, w2p, b2p, vocab_dim):
    B, T, K = x.shape
    M = B * T
    Kp, Hp = w1p.shape
    Np = w2p.shape[1]
    compute_dtype = w1p.dtype
    out_dtype = x.dtype

    tile_m, tile_n, h_chunk, w1_bufs, w2_bufs, vmem_limit = _select_config(
        M, Kp, Hp, Np, compute_dtype, out_dtype)
    Mp = _round_up(M, tile_m)
    grid = (Mp // tile_m, Np // tile_n)
    grid_m = grid[0]

    # Only the activations are (possibly) padded per call, and only on the
    # ragged edge; weights were padded/cast once in prepare_ffn_params.
    x2d = x.reshape(M, K).astype(compute_dtype)
    if (Mp, Kp) != (M, K):
        x2d = jnp.pad(x2d, ((0, Mp - M), (0, Kp - K)))

    cb = jnp.dtype(compute_dtype).itemsize
    ob = jnp.dtype(out_dtype).itemsize
    cost = pl.CostEstimate(
        flops=2 * Mp * (Kp * Hp + Hp * Np),
        transcendentals=0,
        # W2 / b2 are re-streamed once per M-tile.
        bytes_accessed=int(Mp * Kp * cb + Kp * Hp * cb + Hp * 4
                           + grid_m * (Hp * Np * cb + Np * 4)
                           + Mp * Np * ob),
    )

    w1_mode = {"pipeline_mode": pl.Buffered(1)} if w1_bufs == 1 else {}
    w2_mode = {"pipeline_mode": pl.Buffered(w2_bufs)} if w2_bufs != 2 else {}

    grid_spec = pltpu.PrefetchScalarGridSpec(
        num_scalar_prefetch=0,
        grid=grid,
        in_specs=[
            pl.BlockSpec((tile_m, Kp), lambda i, j: (i, 0)),             # x tile
            pl.BlockSpec((Kp, Hp), lambda i, j: (0, 0), **w1_mode),      # W1 (resident)
            pl.BlockSpec((1, Hp), lambda i, j: (0, 0), **w1_mode),       # b1 (resident)
            pl.BlockSpec((Hp, tile_n), lambda i, j: (0, j), **w2_mode),  # W2 (streamed)
            pl.BlockSpec((1, tile_n), lambda i, j: (0, j)),              # b2 (streamed)
        ],
        out_specs=pl.BlockSpec((tile_m, tile_n), lambda i, j: (i, j)),
        scratch_shapes=[pltpu.VMEM((tile_m, Hp), compute_dtype)],        # staged h
    )

    out = pl.pallas_call(
        _make_ffn_kernel(h_chunk),
        out_shape=jax.ShapeDtypeStruct((Mp, Np), out_dtype),
        grid_spec=grid_spec,
        compiler_params=pltpu.CompilerParams(
            dimension_semantics=("parallel", "arbitrary"),
            vmem_limit_bytes=vmem_limit,
        ),
        cost_estimate=cost,
    )(x2d, w1p, b1p, w2p, b2p)

    if (Mp, Np) != (M, vocab_dim):
        out = out[:M, :vocab_dim]
    return out.reshape(B, T, vocab_dim)


def feed_forward(x, params: FFNParams):
    """x: (B, T, n_embd) -> (B, T, vocab_dim). Fused FFN in one pallas_call."""
    return _ffn_forward(x, params.w1p, params.b1p, params.w2p, params.b2p,
                        params.vocab_dim)


def init_params(key, n_embd, vocab_dim, dtype=jnp.float32):
    """PyTorch nn.Linear default init: U(-1/sqrt(in), 1/sqrt(in)), stored (in, out)."""
    hidden = n_embd * 4
    k1, k2, k3, k4 = jax.random.split(key, 4)
    bound1 = 1.0 / math.sqrt(n_embd)
    bound2 = 1.0 / math.sqrt(hidden)
    w1 = jax.random.uniform(k1, (n_embd, hidden), dtype, -bound1, bound1)
    b1 = jax.random.uniform(k2, (hidden,), dtype, -bound1, bound1)
    w2 = jax.random.uniform(k3, (hidden, vocab_dim), dtype, -bound2, bound2)
    b2 = jax.random.uniform(k4, (vocab_dim,), dtype, -bound2, bound2)
    return w1, b1, w2, b2


if __name__ == "__main__":
    # small shapes consistent with the module: batch=2, seq=8, n_embd=32, vocab_dim=64
    B, T, n_embd, vocab_dim = 2, 8, 32, 64

    key = jax.random.PRNGKey(0)
    kx, kp = jax.random.split(key)
    x = jax.random.normal(kx, (B, T, n_embd), dtype=jnp.float32)
    w1, b1, w2, b2 = init_params(kp, n_embd, vocab_dim)

    params = prepare_ffn_params(w1, b1, w2, b2)   # one-time pad/cast of weights
    out = jax.block_until_ready(feed_forward(x, params))

    # reference (plain JAX f32, dropout in eval mode = identity). Kernel uses
    # bf16 MXU inputs with f32 accumulation -> compare at bf16-level tolerance.
    ref = jnp.maximum(x.reshape(-1, n_embd) @ w1 + b1, 0.0) @ w2 + b2
    ref = ref.reshape(B, T, vocab_dim)
    assert out.shape == (B, T, vocab_dim)
    assert jnp.allclose(out, ref, atol=3e-2, rtol=3e-2), \
        float(jnp.max(jnp.abs(out - ref)))

    print("KERNEL_OK")
</pallas_src>

<mosaic_0001>
module attributes {stable_mosaic.version = 11 : i64} {
  func.func @k(%arg0: i32, %arg1: memref<8x128xf32, #tpu.memory_space<vmem>>, %arg2: memref<8x128xf32, #tpu.memory_space<vmem>>) attributes {dimension_semantics = [#tpu.dimension_semantics<arbitrary>], iteration_bounds = array<i64: 1>, scalar_prefetch = 0 : i64, scratch_operands = 0 : i64, tpu.core_type = #tpu.core_type<tc>, window_params = [{pipeline_mode = #tpu.pipeline_mode<synchronous>, transform_indices = @transform_0, window_bounds = array<i64: 8, 128>}, {pipeline_mode = #tpu.pipeline_mode<synchronous>, transform_indices = @transform_1, window_bounds = array<i64: 8, 128>}]} {
    %c0 = arith.constant 0 : index
    %c0_0 = arith.constant 0 : index
    %0 = vector.load %arg1[%c0, %c0_0] : memref<8x128xf32, #tpu.memory_space<vmem>>, vector<8x128xf32>
    %cst = arith.constant 2.000000e+00 : f32
    %1 = vector.broadcast %cst : f32 to vector<8x128xf32>
    %2 = arith.mulf %0, %1 : vector<8x128xf32>
    %c0_1 = arith.constant 0 : index
    %c0_2 = arith.constant 0 : index
    %3 = vector.load %arg2[%c0_1, %c0_2] : memref<8x128xf32, #tpu.memory_space<vmem>>, vector<8x128xf32>
    tpu.vector_store %arg2[%c0_1, %c0_2], %2 {strides = array<i32>} : memref<8x128xf32, #tpu.memory_space<vmem>>, vector<8x128xf32>,
    return
  }
  func.func @transform_0(%arg0: i32) -> (i32, i32) {
    %c0_i32 = arith.constant 0 : i32
    %c0_i32_0 = arith.constant 0 : i32
    %c0_i32_1 = arith.constant 0 : i32
    return %c0_i32, %c0_i32_0 : i32, i32
  }
  func.func @transform_1(%arg0: i32) -> (i32, i32) {
    %c0_i32 = arith.constant 0 : i32
    %c0_i32_0 = arith.constant 0 : i32
    %c0_i32_1 = arith.constant 0 : i32
    return %c0_i32, %c0_i32_0 : i32, i32
  }
}

module attributes {stable_mosaic.version = 11 : i64} {
  func.func @kernel(%arg0: i32, %arg1: i32, %arg2: memref<16x128xbf16, #tpu.memory_space<vmem>>, %arg3: memref<128x128xbf16, #tpu.memory_space<vmem>>, %arg4: memref<1x128xf32, #tpu.memory_space<vmem>>, %arg5: memref<128x128xbf16, #tpu.memory_space<vmem>>, %arg6: memref<1x128xf32, #tpu.memory_space<vmem>>, %arg7: memref<16x128xf32, #tpu.memory_space<vmem>>, %arg8: memref<16x128xbf16, #tpu.memory_space<vmem>>) attributes {dimension_semantics = [#tpu.dimension_semantics<parallel>, #tpu.dimension_semantics<arbitrary>], iteration_bounds = array<i64: 1, 1>, scalar_prefetch = 0 : i64, scratch_operands = 1 : i64, tpu.core_type = #tpu.core_type<tc>, window_params = [{transform_indices = @transform_0, window_bounds = array<i64: 16, 128>}, {pipeline_mode = #tpu.pipeline_mode<synchronous>, transform_indices = @transform_1, window_bounds = array<i64: 128, 128>}, {pipeline_mode = #tpu.pipeline_mode<synchronous>, transform_indices = @transform_2, window_bounds = array<i64: 1, 128>}, {transform_indices = @transform_3, window_bounds = array<i64: 128, 128>}, {transform_indices = @transform_4, window_bounds = array<i64: 1, 128>}, {transform_indices = @transform_5, window_bounds = array<i64: 16, 128>}]} {
    %c0_i32 = arith.constant 0 : i32
    %0 = arith.cmpi eq, %arg1, %c0_i32 : i32
    %1 = arith.extui %0 : i1 to i32
    %c0_i32_0 = arith.constant 0 : i32
    %2 = arith.cmpi ne, %1, %c0_i32_0 : i32
    scf.if %2 {
      %c0_8 = arith.constant 0 : index
      %c0_9 = arith.constant 0 : index
      %10 = vector.load %arg2[%c0_8, %c0_9] : memref<16x128xbf16, #tpu.memory_space<vmem>>, vector<16x128xbf16>
      %c0_10 = arith.constant 0 : index
      %c0_11 = arith.constant 0 : index
      %11 = vector.load %arg3[%c0_10, %c0_11] : memref<128x128xbf16, #tpu.memory_space<vmem>>, vector<128x128xbf16>
      %cst_12 = arith.constant dense<0.000000e+00> : vector<16x128xf32>
      %12 = tpu.matmul %10, %11, %cst_12 {dimension_numbers = #tpu.dot_dimension_numbers<[1], [0], [0], [1], [0, 0, 1, 1], [], []>} : vector<16x128xbf16>, vector<128x128xbf16>, vector<16x128xf32> -> vector<16x128xf32>
      %c0_13 = arith.constant 0 : index
      %c0_14 = arith.constant 0 : index
      %13 = vector.load %arg4[%c0_13, %c0_14] : memref<1x128xf32, #tpu.memory_space<vmem>>, vector<1x128xf32>
      %14 = vector.broadcast %13 : vector<1x128xf32> to vector<16x128xf32>
      %15 = arith.addf %12, %14 : vector<16x128xf32>
      %cst_15 = arith.constant 0.000000e+00 : f32
      %16 = vector.broadcast %cst_15 : f32 to vector<16x128xf32>
      %17 = arith.maximumf %15, %16 : vector<16x128xf32>
      %18 = arith.truncf %17 : vector<16x128xf32> to vector<16x128xbf16>
      %c0_16 = arith.constant 0 : index
      %c0_17 = arith.constant 0 : index
      %19 = vector.load %arg8[%c0_16, %c0_17] : memref<16x128xbf16, #tpu.memory_space<vmem>>, vector<16x128xbf16>
      tpu.vector_store %arg8[%c0_16, %c0_17], %18 {strides = array<i32>} : memref<16x128xbf16, #tpu.memory_space<vmem>>, vector<16x128xbf16>,
    } else {
    }
    %c0 = arith.constant 0 : index
    %c0_1 = arith.constant 0 : index
    %3 = vector.load %arg8[%c0, %c0_1] : memref<16x128xbf16, #tpu.memory_space<vmem>>, vector<16x128xbf16>
    %c0_2 = arith.constant 0 : index
    %c0_3 = arith.constant 0 : index
    %4 = vector.load %arg5[%c0_2, %c0_3] : memref<128x128xbf16, #tpu.memory_space<vmem>>, vector<128x128xbf16>
    %cst = arith.constant dense<0.000000e+00> : vector<16x128xf32>
    %5 = tpu.matmul %3, %4, %cst {dimension_numbers = #tpu.dot_dimension_numbers<[1], [0], [0], [1], [0, 0, 1, 1], [], []>} : vector<16x128xbf16>, vector<128x128xbf16>, vector<16x128xf32> -> vector<16x128xf32>
    %c0_4 = arith.constant 0 : index
    %c0_5 = arith.constant 0 : index
    %6 = vector.load %arg6[%c0_4, %c0_5] : memref<1x128xf32, #tpu.memory_space<vmem>>, vector<1x128xf32>
    %7 = vector.broadcast %6 : vector<1x128xf32> to vector<16x128xf32>
    %8 = arith.addf %5, %7 : vector<16x128xf32>
    %c0_6 = arith.constant 0 : index
    %c0_7 = arith.constant 0 : index
    %9 = vector.load %arg7[%c0_6, %c0_7] : memref<16x128xf32, #tpu.memory_space<vmem>>, vector<16x128xf32>
    tpu.vector_store %arg7[%c0_6, %c0_7], %8 {strides = array<i32>} : memref<16x128xf32, #tpu.memory_space<vmem>>, vector<16x128xf32>,
    return
  }
  func.func @transform_0(%arg0: i32, %arg1: i32) -> (i32, i32) {
    %c0_i32 = arith.constant 0 : i32
    %c0_i32_0 = arith.constant 0 : i32
    return %arg0, %c0_i32 : i32, i32
  }
  func.func @transform_1(%arg0: i32, %arg1: i32) -> (i32, i32) {
    %c0_i32 = arith.constant 0 : i32
    %c0_i32_0 = arith.constant 0 : i32
    %c0_i32_1 = arith.constant 0 : i32
    return %c0_i32, %c0_i32_0 : i32, i32
  }
  func.func @transform_2(%arg0: i32, %arg1: i32) -> (i32, i32) {
    %c0_i32 = arith.constant 0 : i32
    %c0_i32_0 = arith.constant 0 : i32
    %c0_i32_1 = arith.constant 0 : i32
    return %c0_i32, %c0_i32_0 : i32, i32
  }
  func.func @transform_3(%arg0: i32, %arg1: i32) -> (i32, i32) {
    %c0_i32 = arith.constant 0 : i32
    %c0_i32_0 = arith.constant 0 : i32
    return %c0_i32, %arg1 : i32, i32
  }
  func.func @transform_4(%arg0: i32, %arg1: i32) -> (i32, i32) {
    %c0_i32 = arith.constant 0 : i32
    %c0_i32_0 = arith.constant 0 : i32
    return %c0_i32, %arg1 : i32, i32
  }
  func.func @transform_5(%arg0: i32, %arg1: i32) -> (i32, i32) {
    %c0_i32 = arith.constant 0 : i32
    return %arg0, %arg1 : i32, i32
  }
}

</mosaic_0001>

<llo_original>
// kernel: tpu_custom_call.1
$region0: #{tpu_custom_call.1}
  #allocation0 [shape = 'u32[]', space=smem, size = 0x4, offset = 0x4, fixed_abs, tag = 'smem constant byte address 0x4 - core index']
  #allocation1 [shape = 'u32[144,128]{1,0:T(1,128)}', space=vmem, size = 0x12000, scoped, tag = 'internal scratch']
  %s0 = inlined_call_operand.hbm [shape: f32[8,128], index: 0, kind: input, shape index: {}]
  %s1 = inlined_call_operand.hbm [shape: f32[8,128], index: 1, kind: output, shape index: {}]
  %s2 = sld [smem:[#allocation0]]
  $region18: #{tpu_custom_call.1} parent=0
    _
  %s4 = ssub.s32 1, %s2
  %s5 = scalar_select 0, %s4, %s2
  $region1: #{tpu_custom_call.1} parent=0
    #allocation2 [shape = 'u8[4096]{0}', space=vmem, size = 0x1000, scoped, tag = 'input window, operand 0, single buffered']
    #allocation3 [shape = 's32[1]{0}', space=sflag, size = 0x4, scoped, tag = 'scoped memory for tpu_custom_call.1']
    #allocation4 [shape = 's32[1]{0}', space=sflag, size = 0x4, scoped, tag = 'scoped memory for tpu_custom_call.1']
    #allocation5 [shape = 'u8[4096]{0}', space=vmem, size = 0x1000, scoped, tag = 'output window, operand 0, single buffered']
    %6 = vsyncpa [#allocation3], 0
    %7 = vsyncpa [#allocation4], 0
    // Predicated region
    $region2: #{tpu_custom_call.1} parent=1 // pred_check
      _
    $region3: #{tpu_custom_call.1} parent=1 // pred_check_branch
      %9 = sbr.rel (0) target = $region5
    $region4: #{tpu_custom_call.1} parent=1 // pred_region
      %s11 = ssub.s32 128, 128
      %12 = vsyncadd [#allocation3], %s11
      %s14 = sshll.u32 [#allocation2], 4
      %s15 = int_to_ptr.vmem [resolvable:$true] %s14
      %17 = dma.hbm_to_vmem [thread:$0]  %s0, 128, %s15, [#allocation3]
    $region5: #{tpu_custom_call.1} parent=1 // pred_fallthru
      _
    // Predicated region
    $region6: #{tpu_custom_call.1} parent=1 // pred_check
      _
    $region7: #{tpu_custom_call.1} parent=1 // pred_check_branch
      %19 = sbr.rel (0) target = $region9
    $region8: #{tpu_custom_call.1} parent=1 // pred_region
      %20 = dma.done [#allocation3], 128
    $region9: #{tpu_custom_call.1} parent=1 // pred_fallthru
      _
    %v21 = vld [vmem:[#allocation2] sm:$0xff]
    %v22 = vmul.f32 %v21, 2.0
    %23 = vst [vmem:[#allocation5] sm:$0xff] %v22
    // Predicated region
    $region10: #{tpu_custom_call.1} parent=1 // pred_check
      _
    $region11: #{tpu_custom_call.1} parent=1 // pred_check_branch
      %25 = sbr.rel (0) target = $region13
    $region12: #{tpu_custom_call.1} parent=1 // pred_region
      %s27 = ssub.s32 128, 128
      %28 = vsyncadd [#allocation4], %s27
      %s30 = sshll.u32 [#allocation5], 4
      %s31 = int_to_ptr.vmem [resolvable:$true] %s30
      %33 = dma.vmem_to_hbm [thread:$0]  %s31, 128, %s1, [#allocation4]
    $region13: #{tpu_custom_call.1} parent=1 // pred_fallthru
      _
    // Predicated region
    $region14: #{tpu_custom_call.1} parent=1 // pred_check
      _
    $region15: #{tpu_custom_call.1} parent=1 // pred_check_branch
      %35 = sbr.rel (0) target = $region17
    $region16: #{tpu_custom_call.1} parent=1 // pred_region
      %36 = dma.done [#allocation4], 128
    $region17: #{tpu_custom_call.1} parent=1 // pred_fallthru
      _
    %37 = vsyncpa [#allocation3], 1
    %38 = vsyncpa [#allocation4], 1

// kernel: _ffn_forward.1
$region0: #{_ffn_forward.1}
  #allocation0 [shape = 'u32[]', space=smem, size = 0x4, offset = 0x4, fixed_abs, tag = 'smem constant byte address 0x4 - core index']
  #allocation1 [shape = 'u32[144,128]{1,0:T(1,128)}', space=vmem, size = 0x12000, scoped, tag = 'internal scratch']
  #allocation2 [shape = 'bf16[16,128]{1,0:T(16,128)(2,1)}', space=vmem, size = 0x1000, scoped, tag = 'scratch operand']
  %s0 = inlined_call_operand.vmem [shape: bf16[16,128], index: 0, kind: input, shape index: {}]
  %s1 = inlined_call_operand.hbm [shape: bf16[128,128], index: 1, kind: input, shape index: {}]
  %s2 = inlined_call_operand.vmem [shape: f32[1,128], index: 2, kind: input, shape index: {}]
  %s3 = inlined_call_operand.hbm [shape: bf16[128,128], index: 3, kind: input, shape index: {}]
  %s4 = inlined_call_operand.vmem [shape: f32[1,128], index: 4, kind: input, shape index: {}]
  %s5 = inlined_call_operand.vmem [shape: f32[16,128], index: 5, kind: output, shape index: {}]
  %s6 = sld [smem:[#allocation0]]
  $region42: #{_ffn_forward.1} parent=0
    _
  %s8 = ssub.s32 1, %s6
  %s9 = scalar_select 0, %s8, %s6
  $region1: #{_ffn_forward.1} parent=0
    #allocation3 [shape = 'u8[32768]{0}', space=vmem, size = 0x8000, scoped, tag = 'input window, operand 1, single buffered']
    #allocation4 [shape = 's32[1]{0}', space=sflag, size = 0x4, scoped, tag = 'scoped memory for _ffn_forward.1']
    #allocation5 [shape = 'u8[32768]{0}', space=vmem, size = 0x8000, scoped, tag = 'input window, operand 3, single buffered']
    #allocation6 [shape = 's32[1]{0}', space=sflag, size = 0x4, scoped, tag = 'scoped memory for _ffn_forward.1']
    %10 = vsyncpa [#allocation4], 0
    %11 = vsyncpa [#allocation6], 0
    // Predicated region
    $region2: #{_ffn_forward.1} parent=1 // pred_check
      _
    $region3: #{_ffn_forward.1} parent=1 // pred_check_branch
      %13 = sbr.rel (0) target = $region5
    $region4: #{_ffn_forward.1} parent=1 // pred_region
      _
    $region5: #{_ffn_forward.1} parent=1 // pred_fallthru
      _
    // Predicated region
    $region6: #{_ffn_forward.1} parent=1 // pred_check
      _
    $region7: #{_ffn_forward.1} parent=1 // pred_check_branch
      %15 = sbr.rel (0) target = $region9
    $region8: #{_ffn_forward.1} parent=1 // pred_region
      %s17 = ssub.s32 1024, 1024
      %18 = vsyncadd [#allocation4], %s17
      %s19 = sshll.u32 [#allocation3], 4
      %s20 = int_to_ptr.vmem [resolvable:$true] %s19
      %25 = dma.hbm_to_vmem [thread:$0]  %s1, 1024, %s20, [#allocation4], 64, 64, 4
    $region9: #{_ffn_forward.1} parent=1 // pred_fallthru
      _
    // Predicated region
    $region10: #{_ffn_forward.1} parent=1 // pred_check
      _
    $region11: #{_ffn_forward.1} parent=1 // pred_check_branch
      %27 = sbr.rel (0) target = $region13
    $region12: #{_ffn_forward.1} parent=1 // pred_region
      _
    $region13: #{_ffn_forward.1} parent=1 // pred_fallthru
      _
    // Predicated region
    $region14: #{_ffn_forward.1} parent=1 // pred_check
      _
    $region15: #{_ffn_forward.1} parent=1 // pred_check_branch
      %29 = sbr.rel (0) target = $region17
    $region16: #{_ffn_forward.1} parent=1 // pred_region
      %s31 = ssub.s32 1024, 1024
      %32 = vsyncadd [#allocation6], %s31
      %s33 = sshll.u32 [#allocation5], 4
      %s34 = int_to_ptr.vmem [resolvable:$true] %s33
      %39 = dma.hbm_to_vmem [thread:$0]  %s3, 1024, %s34, [#allocation6], 64, 64, 4
    $region17: #{_ffn_forward.1} parent=1 // pred_fallthru
      _
    // Predicated region
    $region18: #{_ffn_forward.1} parent=1 // pred_check
      _
    $region19: #{_ffn_forward.1} parent=1 // pred_check_branch
      %41 = sbr.rel (0) target = $region21
    $region20: #{_ffn_forward.1} parent=1 // pred_region
      _
    $region21: #{_ffn_forward.1} parent=1 // pred_fallthru
      _
    // Predicated region
    $region22: #{_ffn_forward.1} parent=1 // pred_check
      _
    $region23: #{_ffn_forward.1} parent=1 // pred_check_branch
      %43 = sbr.rel (0) target = $region25
    $region24: #{_ffn_forward.1} parent=1 // pred_region
      %44 = dma.done [#allocation4], 1024
    $region25: #{_ffn_forward.1} parent=1 // pred_fallthru
      _
    // Predicated region
    $region26: #{_ffn_forward.1} parent=1 // pred_check
      _
    $region27: #{_ffn_forward.1} parent=1 // pred_check_branch
      %46 = sbr.rel (0) target = $region29
    $region28: #{_ffn_forward.1} parent=1 // pred_region
      %47 = dma.done [#allocation6], 1024
    $region29: #{_ffn_forward.1} parent=1 // pred_fallthru
      _
    %p49 = scmp.eq.s32.totalorder 0, 0
    // Predicated region
    $region30: #{_ffn_forward.1} parent=1 // pred_check
      %p50 = pneg %p49
    $region31: #{_ffn_forward.1} parent=1 // pred_check_branch
      %52 = sbr.rel (%p50) target = $region33
    $region32: #{_ffn_forward.1} parent=1 // pred_region
      %v53 = vld [vmem:[%s0] sm:$0xf]
      %v54 = vld [vmem:[%s0 + $0x4] sm:$0xf]
      %v55 = vld [vmem:[#allocation3] sm:$0xf]
      %v56 = vld [vmem:[#allocation3 + $0x4] sm:$0xf]
      %v57 = vld [vmem:[#allocation3 + $0x8] sm:$0xf]
      %v58 = vld [vmem:[#allocation3 + $0xc] sm:$0xf]
      %v59 = vld [vmem:[#allocation3 + $0x10] sm:$0xf]
      %v60 = vld [vmem:[#allocation3 + $0x14] sm:$0xf]
      %v61 = vld [vmem:[#allocation3 + $0x18] sm:$0xf]
      %v62 = vld [vmem:[#allocation3 + $0x1c] sm:$0xf]
      %v63 = vld [vmem:[#allocation3 + $0x20] sm:$0xf]
      %v64 = vld [vmem:[#allocation3 + $0x24] sm:$0xf]
      %v65 = vld [vmem:[#allocation3 + $0x28] sm:$0xf]
      %v66 = vld [vmem:[#allocation3 + $0x2c] sm:$0xf]
      %v67 = vld [vmem:[#allocation3 + $0x30] sm:$0xf]
      %v68 = vld [vmem:[#allocation3 + $0x34] sm:$0xf]
      %v69 = vld [vmem:[#allocation3 + $0x38] sm:$0xf]
      %v70 = vld [vmem:[#allocation3 + $0x3c] sm:$0xf]
      %v71 = vld [vmem:[%s2] sm:$0x1]
      %v73 = vlaneseq
      %v74 = vshrl.u32 %v73, 7
      %v75 = vsub.s32 0, %v74
      %v76 = vrot.slane %v71, %v75
      %v80 = vunpack.c.l.b16 %v53
      %v81 = vunpack.c.l.b16 %v54
      %v82 = vpack.c.b16 %v81, %v80
      %v100 = vunpack.c.l.b16 %v55
      %v101 = vunpack.c.l.b16 %v56
      %v102 = vunpack.c.l.b16 %v57
      %v103 = vunpack.c.l.b16 %v58
      %v104 = vunpack.c.l.b16 %v59
      %v105 = vunpack.c.l.b16 %v60
      %v106 = vunpack.c.l.b16 %v61
      %v107 = vunpack.c.l.b16 %v62
      %v108 = vunpack.c.l.b16 %v63
      %v109 = vunpack.c.l.b16 %v64
      %v110 = vunpack.c.l.b16 %v65
      %v111 = vunpack.c.l.b16 %v66
      %v112 = vunpack.c.l.b16 %v67
      %v113 = vunpack.c.l.b16 %v68
      %v114 = vunpack.c.l.b16 %v69
      %v115 = vunpack.c.l.b16 %v70
      %v116 = vpack.c.b16 %v101, %v100
      %v117 = vpack.c.b16 %v103, %v102
      %v118 = vpack.c.b16 %v105, %v104
      %v119 = vpack.c.b16 %v107, %v106
      %v120 = vpack.c.b16 %v109, %v108
      %v121 = vpack.c.b16 %v111, %v110
      %v122 = vpack.c.b16 %v113, %v112
      %v123 = vpack.c.b16 %v115, %v114
      %132 = vmatprep.subr.bf16.mxu0 0
      %133 = vmatpush1.bf16.msra.mxu0 %v116
      %134 = vmatprep.subr.bf16.mxu0 0
      %135 = vmatpush1.bf16.msra.mxu0 %v117
      %136 = vmatprep.subr.bf16.mxu0 0
      %137 = vmatpush1.bf16.msra.mxu0 %v118
      %138 = vmatprep.subr.bf16.mxu0 0
      %139 = vmatpush1.bf16.msra.mxu0 %v119
      %140 = vmatprep.subr.bf16.mxu0 0
      %141 = vmatpush1.bf16.msra.mxu0 %v120
      %142 = vmatprep.subr.bf16.mxu0 0
      %143 = vmatpush1.bf16.msra.mxu0 %v121
      %144 = vmatprep.subr.bf16.mxu0 0
      %145 = vmatpush1.bf16.msra.mxu0 %v122
      %146 = vmatprep.subr.bf16.mxu0 0
      %147 = vmatpush1.bf16.msra.mxu0 %v123
      %148 = vmatprep.subr.bf16.mxu0 0
      %149 = vmatpush1.bf16.msra.mxu0 0
      %150 = vmatprep.subr.bf16.mxu0 0
      %151 = vmatpush1.bf16.msra.mxu0 0
      %152 = vmatprep.subr.bf16.mxu0 0
      %153 = vmatpush1.bf16.msra.mxu0 0
      %154 = vmatprep.subr.bf16.mxu0 0
      %155 = vmatpush1.bf16.msra.mxu0 0
      %156 = vmatprep.subr.bf16.mxu0 0
      %157 = vmatpush1.bf16.msra.mxu0 0
      %158 = vmatprep.subr.bf16.mxu0 0
      %159 = vmatpush1.bf16.msra.mxu0 0
      %160 = vmatprep.subr.bf16.mxu0 0
      %161 = vmatpush1.bf16.msra.mxu0 0
      %162 = vmatprep.subr.bf16.mxu0 0
      %163 = vmatpush1.bf16.msra.mxu0 0
      %164 = vmatprep.mubr.bf16.mxu0 0
      %165 = vmatmul.mubr.bf16.gmra.mrb[0].mxu0 %v82
      %v166 = vpop.f32.mrb[0].mxu0
      %v167 = vadd.f32 %v76, %v166
      %v168 = vpop.f32.mrb[0].mxu0
      %v169 = vpop.f32.mrb[0].mxu0
      %v170 = vadd.f32 %v76, %v169
      %v171 = vpop.f32.mrb[0].mxu0
      %172 = vdwg.mxu0
      %v173 = vmax.f32 %v167, 0.0
      %v174 = vmax.f32 %v170, 0.0
      %v175 = vpack.c.bf16 %v174, %v173
      %176 = vst [vmem:[#allocation2] sm:$0xff] %v175
    $region33: #{_ffn_forward.1} parent=1 // pred_fallthru
      _
    %v177 = vld [vmem:[#allocation2] sm:$0xff]
    %v178 = vld [vmem:[#allocation5] sm:$0xf]
    %v179 = vld [vmem:[#allocation5 + $0x4] sm:$0xf]
    %v180 = vld [vmem:[#allocation5 + $0x8] sm:$0xf]
    %v181 = vld [vmem:[#allocation5 + $0xc] sm:$0xf]
    %v182 = vld [vmem:[#allocation5 + $0x10] sm:$0xf]
    %v183 = vld [vmem:[#allocation5 + $0x14] sm:$0xf]
    %v184 = vld [vmem:[#allocation5 + $0x18] sm:$0xf]
    %v185 = vld [vmem:[#allocation5 + $0x1c] sm:$0xf]
    %v186 = vld [vmem:[#allocation5 + $0x20] sm:$0xf]
    %v187 = vld [vmem:[#allocation5 + $0x24] sm:$0xf]
    %v188 = vld [vmem:[#allocation5 + $0x28] sm:$0xf]
    %v189 = vld [vmem:[#allocation5 + $0x2c] sm:$0xf]
    %v190 = vld [vmem:[#allocation5 + $0x30] sm:$0xf]
    %v191 = vld [vmem:[#allocation5 + $0x34] sm:$0xf]
    %v192 = vld [vmem:[#allocation5 + $0x38] sm:$0xf]
    %v193 = vld [vmem:[#allocation5 + $0x3c] sm:$0xf]
    %v194 = vld [vmem:[%s4] sm:$0x1]
    %v196 = vlaneseq
    %v197 = vshrl.u32 %v196, 7
    %v198 = vsub.s32 0, %v197
    %v199 = vrot.slane %v194, %v198
    %v217 = vunpack.c.l.b16 %v178
    %v218 = vunpack.c.l.b16 %v179
    %v219 = vunpack.c.l.b16 %v180
    %v220 = vunpack.c.l.b16 %v181
    %v221 = vunpack.c.l.b16 %v182
    %v222 = vunpack.c.l.b16 %v183
    %v223 = vunpack.c.l.b16 %v184
    %v224 = vunpack.c.l.b16 %v185
    %v225 = vunpack.c.l.b16 %v186
    %v226 = vunpack.c.l.b16 %v187
    %v227 = vunpack.c.l.b16 %v188
    %v228 = vunpack.c.l.b16 %v189
    %v229 = vunpack.c.l.b16 %v190
    %v230 = vunpack.c.l.b16 %v191
    %v231 = vunpack.c.l.b16 %v192
    %v232 = vunpack.c.l.b16 %v193
    %v233 = vpack.c.b16 %v218, %v217
    %v234 = vpack.c.b16 %v220, %v219
    %v235 = vpack.c.b16 %v222, %v221
    %v236 = vpack.c.b16 %v224, %v223
    %v237 = vpack.c.b16 %v226, %v225
    %v238 = vpack.c.b16 %v228, %v227
    %v239 = vpack.c.b16 %v230, %v229
    %v240 = vpack.c.b16 %v232, %v231
    %249 = vmatprep.subr.bf16.mxu0 0
    %250 = vmatpush1.bf16.msra.mxu0 %v233
    %251 = vmatprep.subr.bf16.mxu0 0
    %252 = vmatpush1.bf16.msra.mxu0 %v234
    %253 = vmatprep.subr.bf16.mxu0 0
    %254 = vmatpush1.bf16.msra.mxu0 %v235
    %255 = vmatprep.subr.bf16.mxu0 0
    %256 = vmatpush1.bf16.msra.mxu0 %v236
    %257 = vmatprep.subr.bf16.mxu0 0
    %258 = vmatpush1.bf16.msra.mxu0 %v237
    %259 = vmatprep.subr.bf16.mxu0 0
    %260 = vmatpush1.bf16.msra.mxu0 %v238
    %261 = vmatprep.subr.bf16.mxu0 0
    %262 = vmatpush1.bf16.msra.mxu0 %v239
    %263 = vmatprep.subr.bf16.mxu0 0
    %264 = vmatpush1.bf16.msra.mxu0 %v240
    %265 = vmatprep.subr.bf16.mxu0 0
    %266 = vmatpush1.bf16.msra.mxu0 0
    %267 = vmatprep.subr.bf16.mxu0 0
    %268 = vmatpush1.bf16.msra.mxu0 0
    %269 = vmatprep.subr.bf16.mxu0 0
    %270 = vmatpush1.bf16.msra.mxu0 0
    %271 = vmatprep.subr.bf16.mxu0 0
    %272 = vmatpush1.bf16.msra.mxu0 0
    %273 = vmatprep.subr.bf16.mxu0 0
    %274 = vmatpush1.bf16.msra.mxu0 0
    %275 = vmatprep.subr.bf16.mxu0 0
    %276 = vmatpush1.bf16.msra.mxu0 0
    %277 = vmatprep.subr.bf16.mxu0 0
    %278 = vmatpush1.bf16.msra.mxu0 0
    %279 = vmatprep.subr.bf16.mxu0 0
    %280 = vmatpush1.bf16.msra.mxu0 0
    %281 = vmatprep.mubr.bf16.mxu0 0
    %282 = vmatmul.mubr.bf16.gmra.mrb[0].mxu0 %v177
    %v283 = vpop.f32.mrb[0].mxu0
    %v284 = vadd.f32 %v199, %v283
    %v285 = vpop.f32.mrb[0].mxu0
    %v286 = vpop.f32.mrb[0].mxu0
    %v287 = vadd.f32 %v199, %v286
    %v288 = vpop.f32.mrb[0].mxu0
    %289 = vdwg.mxu0
    %290 = vst [vmem:[%s5] sm:$0xff] %v284
    %291 = vst [vmem:[%s5 + $0x8] sm:$0xff] %v287
    // Predicated region
    $region34: #{_ffn_forward.1} parent=1 // pred_check
      _
    $region35: #{_ffn_forward.1} parent=1 // pred_check_branch
      %293 = sbr.rel (0) target = $region37
    $region36: #{_ffn_forward.1} parent=1 // pred_region
      _
    $region37: #{_ffn_forward.1} parent=1 // pred_fallthru
      _
    // Predicated region
    $region38: #{_ffn_forward.1} parent=1 // pred_check
      _
    $region39: #{_ffn_forward.1} parent=1 // pred_check_branch
      %295 = sbr.rel (0) target = $region41
    $region40: #{_ffn_forward.1} parent=1 // pred_region
      _
    $region41: #{_ffn_forward.1} parent=1 // pred_fallthru
      _
    %296 = vsyncpa [#allocation4], 1
    %297 = vsyncpa [#allocation6], 1

</llo_original>
